<compile_context>
chip_gen: v7x
topology: tpu7x:2x2x1
jax: 0.10.0
libtpu: 0.0.40
codegen_flags: <defaults>
</compile_context>

<pallas_src>
import jax
import jax.numpy as jnp
from jax.experimental import pallas as pl
from jax.experimental.pallas import tpu as pltpu

INPUT_SIZE = 312
HIDDEN_SIZE = 312
OUTPUT_SIZE = 2

# Lane-aligned (multiple-of-128) padded dims.
F_PAD = 384          # input features 312 -> 384
H_PAD = 384          # hidden 312 -> 384
O_PAD = 128          # output 2 -> 128 (lane-dense output stores)

_NEG_INF = -1e30     # bias for padded output columns -> exp() == 0 in softmax


def _round_up(x, m):
    return (x + m - 1) // m * m


def tl_network_kernel(x_ref, w1_ref, b1_ref, w2_ref, b2_ref, o_ref):
    # ---- Linear 1 + ReLU: bf16 inputs on the MXU, f32 accumulation ----
    h = jnp.dot(x_ref[...], w1_ref[...], preferred_element_type=jnp.float32)
    h = jnp.maximum(h + b1_ref[...], 0.0)            # bias + ReLU in f32 (VPU)

    # ---- Linear 2 (output padded to 128 lanes, bf16 MXU, f32 acc) ----
    logits = jnp.dot(h.astype(jnp.bfloat16), w2_ref[...],
                     preferred_element_type=jnp.float32)
    logits = logits + b2_ref[...]                    # padded columns get -1e30

    # ---- Numerically stable softmax over the (padded) last axis ----
    m = jnp.max(logits, axis=-1, keepdims=True)
    e = jnp.exp(logits - m)                          # padded cols -> 0
    denom = jnp.sum(e, axis=-1, keepdims=True)
    o_ref[...] = (e * pl.reciprocal(denom, approx=True)).astype(o_ref.dtype)


def tl_network(x, w1, b1, w2, b2, *, block_b=512):
    """x: [B, 312] f32; w1: [312, 312] (in, out); b1: [312];
    w2: [312, 2] (in, out); b2: [2].  Returns [B, 2] f32 probabilities."""
    B = x.shape[0]
    tb = min(block_b, _round_up(B, 8))               # sublane-aligned batch tile
    b_pad = _round_up(B, tb)

    # Pad + cast once in the wrapper; weights stay resident in VMEM in-kernel.
    x_p = jnp.zeros((b_pad, F_PAD), jnp.bfloat16).at[:B, :INPUT_SIZE].set(
        x.astype(jnp.bfloat16))
    w1_p = jnp.zeros((F_PAD, H_PAD), jnp.bfloat16).at[
        :INPUT_SIZE, :HIDDEN_SIZE].set(w1.astype(jnp.bfloat16))
    b1_p = jnp.zeros((1, H_PAD), jnp.float32).at[0, :HIDDEN_SIZE].set(b1)
    w2_p = jnp.zeros((H_PAD, O_PAD), jnp.bfloat16).at[
        :HIDDEN_SIZE, :OUTPUT_SIZE].set(w2.astype(jnp.bfloat16))
    b2_p = jnp.full((1, O_PAD), _NEG_INF, jnp.float32).at[0, :OUTPUT_SIZE].set(b2)

    cost = pl.CostEstimate(
        flops=2 * B * (INPUT_SIZE * HIDDEN_SIZE + HIDDEN_SIZE * OUTPUT_SIZE),
        transcendentals=B * OUTPUT_SIZE,
        bytes_accessed=(x_p.size * 2 + w1_p.size * 2 + w2_p.size * 2
                        + b1_p.size * 4 + b2_p.size * 4 + b_pad * O_PAD * 4),
    )

    out = pl.pallas_call(
        tl_network_kernel,
        out_shape=jax.ShapeDtypeStruct((b_pad, O_PAD), jnp.float32),
        grid=(b_pad // tb,),
        in_specs=[
            pl.BlockSpec((tb, F_PAD), lambda i: (i, 0)),      # x: tiled over batch
            pl.BlockSpec((F_PAD, H_PAD), lambda i: (0, 0)),   # W1: resident
            pl.BlockSpec((1, H_PAD), lambda i: (0, 0)),       # b1: resident
            pl.BlockSpec((H_PAD, O_PAD), lambda i: (0, 0)),   # W2: resident
            pl.BlockSpec((1, O_PAD), lambda i: (0, 0)),       # b2: resident
        ],
        out_specs=pl.BlockSpec((tb, O_PAD), lambda i: (i, 0)),
        compiler_params=pltpu.CompilerParams(
            dimension_semantics=("parallel",)),               # 2-TC shard on v7x
        cost_estimate=cost,
    )(x_p, w1_p, b1_p, w2_p, b2_p)

    return out[:B, :OUTPUT_SIZE]


def init_params(key):
    """PyTorch nn.Linear-style init (U[-1/sqrt(fan_in), +1/sqrt(fan_in)]),
    stored as [in, out] so the kernel computes x @ W (== x @ W_pt.T)."""
    k1, k2, k3, k4 = jax.random.split(key, 4)
    bound1 = 1.0 / (INPUT_SIZE ** 0.5)
    bound2 = 1.0 / (HIDDEN_SIZE ** 0.5)
    w1 = jax.random.uniform(k1, (INPUT_SIZE, HIDDEN_SIZE), jnp.float32, -bound1, bound1)
    b1 = jax.random.uniform(k2, (HIDDEN_SIZE,), jnp.float32, -bound1, bound1)
    w2 = jax.random.uniform(k3, (HIDDEN_SIZE, OUTPUT_SIZE), jnp.float32, -bound2, bound2)
    b2 = jax.random.uniform(k4, (OUTPUT_SIZE,), jnp.float32, -bound2, bound2)
    return w1, b1, w2, b2


def reference(x, w1, b1, w2, b2, *, matmul_dtype=jnp.float32):
    xd = x.astype(matmul_dtype)
    h = jnp.dot(xd, w1.astype(matmul_dtype),
                preferred_element_type=jnp.float32) + b1
    h = jnp.maximum(h, 0.0)
    logits = jnp.dot(h.astype(matmul_dtype), w2.astype(matmul_dtype),
                     preferred_element_type=jnp.float32) + b2
    return jax.nn.softmax(logits, axis=-1)


if __name__ == "__main__":
    key = jax.random.PRNGKey(0)
    kx, kp = jax.random.split(key)

    B = 8  # small demo batch
    x = jax.random.normal(kx, (B, INPUT_SIZE), jnp.float32)
    w1, b1, w2, b2 = init_params(kp)

    out = jax.jit(tl_network)(x, w1, b1, w2, b2)
    out = jax.block_until_ready(out)

    # Precision-matched reference (bf16 matmuls, f32 accumulation) and the
    # pure-f32 reference; tolerances account for bf16 MXU + approx reciprocal.
    ref_bf16 = reference(x, w1, b1, w2, b2, matmul_dtype=jnp.bfloat16)
    ref_f32 = reference(x, w1, b1, w2, b2, matmul_dtype=jnp.float32)

    assert out.shape == (B, OUTPUT_SIZE)
    assert jnp.allclose(out, ref_bf16, atol=1e-2), "mismatch vs bf16-matched reference"
    assert jnp.allclose(out, ref_f32, atol=5e-2), "mismatch vs f32 reference"
    assert jnp.allclose(jnp.sum(out, axis=-1), 1.0, atol=1e-2), "rows must sum to ~1"

    print("KERNEL_OK")
</pallas_src>

<mosaic_0001>
module attributes {stable_mosaic.version = 11 : i64} {
  func.func @tl_network_kernel(%arg0: i32, %arg1: memref<8x384xbf16, #tpu.memory_space<vmem>>, %arg2: memref<384x384xbf16, #tpu.memory_space<vmem>>, %arg3: memref<1x384xf32, #tpu.memory_space<vmem>>, %arg4: memref<384x128xbf16, #tpu.memory_space<vmem>>, %arg5: memref<1x128xf32, #tpu.memory_space<vmem>>, %arg6: memref<8x128xf32, #tpu.memory_space<vmem>>) attributes {dimension_semantics = [#tpu.dimension_semantics<parallel>], iteration_bounds = array<i64: 1>, scalar_prefetch = 0 : i64, scratch_operands = 0 : i64, tpu.core_type = #tpu.core_type<tc>, window_params = [{transform_indices = @transform_0, window_bounds = array<i64: 8, 384>}, {pipeline_mode = #tpu.pipeline_mode<synchronous>, transform_indices = @transform_1, window_bounds = array<i64: 384, 384>}, {pipeline_mode = #tpu.pipeline_mode<synchronous>, transform_indices = @transform_2, window_bounds = array<i64: 1, 384>}, {pipeline_mode = #tpu.pipeline_mode<synchronous>, transform_indices = @transform_3, window_bounds = array<i64: 384, 128>}, {pipeline_mode = #tpu.pipeline_mode<synchronous>, transform_indices = @transform_4, window_bounds = array<i64: 1, 128>}, {transform_indices = @transform_5, window_bounds = array<i64: 8, 128>}]} {
    %c0 = arith.constant 0 : index
    %c0_0 = arith.constant 0 : index
    %0 = vector.load %arg1[%c0, %c0_0] : memref<8x384xbf16, #tpu.memory_space<vmem>>, vector<8x384xbf16>
    %c0_1 = arith.constant 0 : index
    %c0_2 = arith.constant 0 : index
    %1 = vector.load %arg2[%c0_1, %c0_2] : memref<384x384xbf16, #tpu.memory_space<vmem>>, vector<384x384xbf16>
    %cst = arith.constant dense<0.000000e+00> : vector<8x384xf32>
    %2 = tpu.matmul %0, %1, %cst {dimension_numbers = #tpu.dot_dimension_numbers<[1], [0], [0], [1], [0, 0, 1, 1], [], []>} : vector<8x384xbf16>, vector<384x384xbf16>, vector<8x384xf32> -> vector<8x384xf32>
    %c0_3 = arith.constant 0 : index
    %c0_4 = arith.constant 0 : index
    %3 = vector.load %arg3[%c0_3, %c0_4] : memref<1x384xf32, #tpu.memory_space<vmem>>, vector<1x384xf32>
    %4 = vector.broadcast %3 : vector<1x384xf32> to vector<8x384xf32>
    %5 = arith.addf %2, %4 : vector<8x384xf32>
    %cst_5 = arith.constant 0.000000e+00 : f32
    %6 = vector.broadcast %cst_5 : f32 to vector<8x384xf32>
    %7 = arith.maximumf %5, %6 : vector<8x384xf32>
    %8 = arith.truncf %7 : vector<8x384xf32> to vector<8x384xbf16>
    %c0_6 = arith.constant 0 : index
    %c0_7 = arith.constant 0 : index
    %9 = vector.load %arg4[%c0_6, %c0_7] : memref<384x128xbf16, #tpu.memory_space<vmem>>, vector<384x128xbf16>
    %cst_8 = arith.constant dense<0.000000e+00> : vector<8x128xf32>
    %10 = tpu.matmul %8, %9, %cst_8 {dimension_numbers = #tpu.dot_dimension_numbers<[1], [0], [0], [1], [0, 0, 1, 1], [], []>} : vector<8x384xbf16>, vector<384x128xbf16>, vector<8x128xf32> -> vector<8x128xf32>
    %c0_9 = arith.constant 0 : index
    %c0_10 = arith.constant 0 : index
    %11 = vector.load %arg5[%c0_9, %c0_10] : memref<1x128xf32, #tpu.memory_space<vmem>>, vector<1x128xf32>
    %12 = vector.broadcast %11 : vector<1x128xf32> to vector<8x128xf32>
    %13 = arith.addf %10, %12 : vector<8x128xf32>
    %cst_11 = arith.constant dense<0xFF800000> : vector<8xf32>
    %14 = vector.multi_reduction <maximumf>, %13, %cst_11 [1] : vector<8x128xf32> to vector<8xf32>
    %15 = vector.shape_cast %14 : vector<8xf32> to vector<8x1xf32>
    %16 = vector.broadcast %15 : vector<8x1xf32> to vector<8x128xf32>
    %17 = arith.subf %13, %16 : vector<8x128xf32>
    %18 = math.exp %17 : vector<8x128xf32>
    %cst_12 = arith.constant dense<0.000000e+00> : vector<8xf32>
    %19 = vector.multi_reduction <add>, %18, %cst_12 [1] : vector<8x128xf32> to vector<8xf32>
    %20 = vector.shape_cast %19 : vector<8xf32> to vector<8x1xf32>
    %21 = tpu.reciprocal %20 {approx = true} : vector<8x1xf32> -> vector<8x1xf32>
    %22 = vector.broadcast %21 : vector<8x1xf32> to vector<8x128xf32>
    %23 = arith.mulf %18, %22 : vector<8x128xf32>
    %c0_13 = arith.constant 0 : index
    %c0_14 = arith.constant 0 : index
    %24 = vector.load %arg6[%c0_13, %c0_14] : memref<8x128xf32, #tpu.memory_space<vmem>>, vector<8x128xf32>
    tpu.vector_store %arg6[%c0_13, %c0_14], %23 {strides = array<i32>} : memref<8x128xf32, #tpu.memory_space<vmem>>, vector<8x128xf32>,
    return
  }
  func.func @transform_0(%arg0: i32) -> (i32, i32) {
    %c0_i32 = arith.constant 0 : i32
    %c0_i32_0 = arith.constant 0 : i32
    return %arg0, %c0_i32 : i32, i32
  }
  func.func @transform_1(%arg0: i32) -> (i32, i32) {
    %c0_i32 = arith.constant 0 : i32
    %c0_i32_0 = arith.constant 0 : i32
    %c0_i32_1 = arith.constant 0 : i32
    return %c0_i32, %c0_i32_0 : i32, i32
  }
  func.func @transform_2(%arg0: i32) -> (i32, i32) {
    %c0_i32 = arith.constant 0 : i32
    %c0_i32_0 = arith.constant 0 : i32
    %c0_i32_1 = arith.constant 0 : i32
    return %c0_i32, %c0_i32_0 : i32, i32
  }
  func.func @transform_3(%arg0: i32) -> (i32, i32) {
    %c0_i32 = arith.constant 0 : i32
    %c0_i32_0 = arith.constant 0 : i32
    %c0_i32_1 = arith.constant 0 : i32
    return %c0_i32, %c0_i32_0 : i32, i32
  }
  func.func @transform_4(%arg0: i32) -> (i32, i32) {
    %c0_i32 = arith.constant 0 : i32
    %c0_i32_0 = arith.constant 0 : i32
    %c0_i32_1 = arith.constant 0 : i32
    return %c0_i32, %c0_i32_0 : i32, i32
  }
  func.func @transform_5(%arg0: i32) -> (i32, i32) {
    %c0_i32 = arith.constant 0 : i32
    %c0_i32_0 = arith.constant 0 : i32
    return %arg0, %c0_i32 : i32, i32
  }
}

</mosaic_0001>

<llo_original>
// kernel: tl_network.1
$region0: #{tl_network.1}
  #allocation0 [shape = 'u32[]', space=smem, size = 0x4, offset = 0x4, fixed_abs, tag = 'smem constant byte address 0x4 - core index']
  #allocation1 [shape = 'u32[144,128]{1,0:T(1,128)}', space=vmem, size = 0x12000, scoped, tag = 'internal scratch']
  %s0 = inlined_call_operand.vmem [shape: bf16[8,384], index: 0, kind: input, shape index: {}]
  %s1 = inlined_call_operand.vmem [shape: bf16[384,384], index: 1, kind: input, shape index: {}]
  %s2 = inlined_call_operand.vmem [shape: f32[1,384], index: 2, kind: input, shape index: {}]
  %s3 = inlined_call_operand.vmem [shape: bf16[384,128], index: 3, kind: input, shape index: {}]
  %s4 = inlined_call_operand.vmem [shape: f32[1,128], index: 4, kind: input, shape index: {}]
  %s5 = inlined_call_operand.vmem [shape: f32[8,128], index: 5, kind: output, shape index: {}]
  %s6 = sld [smem:[#allocation0]]
  $region30: #{tl_network.1} parent=0
    _
  %s8 = ssub.s32 1, %s6
  %s9 = scalar_select 0, %s8, %s6
  // Predicated region
  $region2: #{tl_network.1} parent=0 // pred_check
    _
  $region3: #{tl_network.1} parent=0 // pred_check_branch
    %11 = sbr.rel (0) target = $region5
  $region4: #{tl_network.1} parent=0 // pred_region
    _
  $region5: #{tl_network.1} parent=0 // pred_fallthru
    _
  // Predicated region
  $region6: #{tl_network.1} parent=0 // pred_check
    _
  $region7: #{tl_network.1} parent=0 // pred_check_branch
    %13 = sbr.rel (0) target = $region9
  $region8: #{tl_network.1} parent=0 // pred_region
    _
  $region9: #{tl_network.1} parent=0 // pred_fallthru
    _
  // Predicated region
  $region10: #{tl_network.1} parent=0 // pred_check
    _
  $region11: #{tl_network.1} parent=0 // pred_check_branch
    %15 = sbr.rel (0) target = $region13
  $region12: #{tl_network.1} parent=0 // pred_region
    _
  $region13: #{tl_network.1} parent=0 // pred_fallthru
    _
  // Predicated region
  $region14: #{tl_network.1} parent=0 // pred_check
    _
  $region15: #{tl_network.1} parent=0 // pred_check_branch
    %17 = sbr.rel (0) target = $region17
  $region16: #{tl_network.1} parent=0 // pred_region
    _
  $region17: #{tl_network.1} parent=0 // pred_fallthru
    _
  // Predicated region
  $region18: #{tl_network.1} parent=0 // pred_check
    _
  $region19: #{tl_network.1} parent=0 // pred_check_branch
    %19 = sbr.rel (0) target = $region21
  $region20: #{tl_network.1} parent=0 // pred_region
    _
  $region21: #{tl_network.1} parent=0 // pred_fallthru
    _
  %v21 = vld [vmem:[%s0] sm:$0xff]
  %v22 = vld [vmem:[%s0 + $0x8] sm:$0xf]
  %v23 = vld [vmem:[%s1] sm:$0xff]
  %v24 = vld [vmem:[%s1 + $0x8] sm:$0xf]
  %v25 = vld [vmem:[%s1 + $0xc] sm:$0xff]
  %v26 = vld [vmem:[%s1 + $0x14] sm:$0xf]
  %v27 = vld [vmem:[%s1 + $0x18] sm:$0xff]
  %v28 = vld [vmem:[%s1 + $0x20] sm:$0xf]
  %v29 = vld [vmem:[%s1 + $0x24] sm:$0xff]
  %v30 = vld [vmem:[%s1 + $0x2c] sm:$0xf]
  %v31 = vld [vmem:[%s1 + $0x30] sm:$0xff]
  %v32 = vld [vmem:[%s1 + $0x38] sm:$0xf]
  %v33 = vld [vmem:[%s1 + $0x3c] sm:$0xff]
  %v34 = vld [vmem:[%s1 + $0x44] sm:$0xf]
  %v35 = vld [vmem:[%s1 + $0x48] sm:$0xff]
  %v36 = vld [vmem:[%s1 + $0x50] sm:$0xf]
  %v37 = vld [vmem:[%s1 + $0x54] sm:$0xff]
  %v38 = vld [vmem:[%s1 + $0x5c] sm:$0xf]
  %v39 = vld [vmem:[%s1 + $0x60] sm:$0xff]
  %v40 = vld [vmem:[%s1 + $0x68] sm:$0xf]
  %v41 = vld [vmem:[%s1 + $0x6c] sm:$0xff]
  %v42 = vld [vmem:[%s1 + $0x74] sm:$0xf]
  %v43 = vld [vmem:[%s1 + $0x78] sm:$0xff]
  %v44 = vld [vmem:[%s1 + $0x80] sm:$0xf]
  %v45 = vld [vmem:[%s1 + $0x84] sm:$0xff]
  %v46 = vld [vmem:[%s1 + $0x8c] sm:$0xf]
  %v47 = vld [vmem:[%s1 + $0x90] sm:$0xff]
  %v48 = vld [vmem:[%s1 + $0x98] sm:$0xf]
  %v49 = vld [vmem:[%s1 + $0x9c] sm:$0xff]
  %v50 = vld [vmem:[%s1 + $0xa4] sm:$0xf]
  %v51 = vld [vmem:[%s1 + $0xa8] sm:$0xff]
  %v52 = vld [vmem:[%s1 + $0xb0] sm:$0xf]
  %v53 = vld [vmem:[%s1 + $0xb4] sm:$0xff]
  %v54 = vld [vmem:[%s1 + $0xbc] sm:$0xf]
  %v55 = vld [vmem:[%s1 + $0xc0] sm:$0xff]
  %v56 = vld [vmem:[%s1 + $0xc8] sm:$0xf]
  %v57 = vld [vmem:[%s1 + $0xcc] sm:$0xff]
  %v58 = vld [vmem:[%s1 + $0xd4] sm:$0xf]
  %v59 = vld [vmem:[%s1 + $0xd8] sm:$0xff]
  %v60 = vld [vmem:[%s1 + $0xe0] sm:$0xf]
  %v61 = vld [vmem:[%s1 + $0xe4] sm:$0xff]
  %v62 = vld [vmem:[%s1 + $0xec] sm:$0xf]
  %v63 = vld [vmem:[%s1 + $0xf0] sm:$0xff]
  %v64 = vld [vmem:[%s1 + $0xf8] sm:$0xf]
  %v65 = vld [vmem:[%s1 + $0xfc] sm:$0xff]
  %v66 = vld [vmem:[%s1 + $0x104] sm:$0xf]
  %v67 = vld [vmem:[%s1 + $0x108] sm:$0xff]
  %v68 = vld [vmem:[%s1 + $0x110] sm:$0xf]
  %v69 = vld [vmem:[%s1 + $0x114] sm:$0xff]
  %v70 = vld [vmem:[%s1 + $0x11c] sm:$0xf]
  %v71 = vld [vmem:[%s1 + $0x120] sm:$0xff]
  %v72 = vld [vmem:[%s1 + $0x128] sm:$0xf]
  %v73 = vld [vmem:[%s1 + $0x12c] sm:$0xff]
  %v74 = vld [vmem:[%s1 + $0x134] sm:$0xf]
  %v75 = vld [vmem:[%s1 + $0x138] sm:$0xff]
  %v76 = vld [vmem:[%s1 + $0x140] sm:$0xf]
  %v77 = vld [vmem:[%s1 + $0x144] sm:$0xff]
  %v78 = vld [vmem:[%s1 + $0x14c] sm:$0xf]
  %v79 = vld [vmem:[%s1 + $0x150] sm:$0xff]
  %v80 = vld [vmem:[%s1 + $0x158] sm:$0xf]
  %v81 = vld [vmem:[%s1 + $0x15c] sm:$0xff]
  %v82 = vld [vmem:[%s1 + $0x164] sm:$0xf]
  %v83 = vld [vmem:[%s1 + $0x168] sm:$0xff]
  %v84 = vld [vmem:[%s1 + $0x170] sm:$0xf]
  %v85 = vld [vmem:[%s1 + $0x174] sm:$0xff]
  %v86 = vld [vmem:[%s1 + $0x17c] sm:$0xf]
  %v87 = vld [vmem:[%s1 + $0x180] sm:$0xff]
  %v88 = vld [vmem:[%s1 + $0x188] sm:$0xf]
  %v89 = vld [vmem:[%s1 + $0x18c] sm:$0xff]
  %v90 = vld [vmem:[%s1 + $0x194] sm:$0xf]
  %v91 = vld [vmem:[%s1 + $0x198] sm:$0xff]
  %v92 = vld [vmem:[%s1 + $0x1a0] sm:$0xf]
  %v93 = vld [vmem:[%s1 + $0x1a4] sm:$0xff]
  %v94 = vld [vmem:[%s1 + $0x1ac] sm:$0xf]
  %v95 = vld [vmem:[%s1 + $0x1b0] sm:$0xff]
  %v96 = vld [vmem:[%s1 + $0x1b8] sm:$0xf]
  %v97 = vld [vmem:[%s1 + $0x1bc] sm:$0xff]
  %v98 = vld [vmem:[%s1 + $0x1c4] sm:$0xf]
  %v99 = vld [vmem:[%s1 + $0x1c8] sm:$0xff]
  %v100 = vld [vmem:[%s1 + $0x1d0] sm:$0xf]
  %v101 = vld [vmem:[%s1 + $0x1d4] sm:$0xff]
  %v102 = vld [vmem:[%s1 + $0x1dc] sm:$0xf]
  %v103 = vld [vmem:[%s1 + $0x1e0] sm:$0xff]
  %v104 = vld [vmem:[%s1 + $0x1e8] sm:$0xf]
  %v105 = vld [vmem:[%s1 + $0x1ec] sm:$0xff]
  %v106 = vld [vmem:[%s1 + $0x1f4] sm:$0xf]
  %v107 = vld [vmem:[%s1 + $0x1f8] sm:$0xff]
  %v108 = vld [vmem:[%s1 + $0x200] sm:$0xf]
  %v109 = vld [vmem:[%s1 + $0x204] sm:$0xff]
  %v110 = vld [vmem:[%s1 + $0x20c] sm:$0xf]
  %v111 = vld [vmem:[%s1 + $0x210] sm:$0xff]
  %v112 = vld [vmem:[%s1 + $0x218] sm:$0xf]
  %v113 = vld [vmem:[%s1 + $0x21c] sm:$0xff]
  %v114 = vld [vmem:[%s1 + $0x224] sm:$0xf]
  %v115 = vld [vmem:[%s1 + $0x228] sm:$0xff]
  %v116 = vld [vmem:[%s1 + $0x230] sm:$0xf]
  %v117 = vld [vmem:[%s1 + $0x234] sm:$0xff]
  %v118 = vld [vmem:[%s1 + $0x23c] sm:$0xf]
  %v119 = vld [vmem:[%s2] sm:$0x7]
  %v121 = vlaneseq
  %v122 = vshrl.u32 %v121, 7
  %v123 = vsub.s32 0, %v122
  %v124 = vrot.slane %v119, %v123
  %v125 = vlaneseq
  %v126 = vshrl.u32 %v125, 7
  %v127 = vsub.s32 1, %v126
  %v128 = vrot.slane %v119, %v127
  %v129 = vlaneseq
  %v130 = vshrl.u32 %v129, 7
  %v131 = vsub.s32 2, %v130
  %v132 = vrot.slane %v119, %v131
  %v138 = vunpack.c.l.b16 %v21
  %v139 = vunpack.c.h.b16 %v21
  %v140 = vunpack.c.l.b16 %v22
  %v141 = vpack.c.b16 %v138, %v138
  %v142 = vpack.c.b16 %v139, %v139
  %v143 = vpack.c.b16 %v140, %v140
  %v243 = vunpack.c.l.b16 %v23
  %v244 = vunpack.c.h.b16 %v23
  %v245 = vunpack.c.l.b16 %v24
  %v246 = vunpack.c.l.b16 %v25
  %v247 = vunpack.c.h.b16 %v25
  %v248 = vunpack.c.l.b16 %v26
  %v249 = vunpack.c.l.b16 %v27
  %v250 = vunpack.c.h.b16 %v27
  %v251 = vunpack.c.l.b16 %v28
  %v252 = vunpack.c.l.b16 %v29
  %v253 = vunpack.c.h.b16 %v29
  %v254 = vunpack.c.l.b16 %v30
  %v255 = vunpack.c.l.b16 %v31
  %v256 = vunpack.c.h.b16 %v31
  %v257 = vunpack.c.l.b16 %v32
  %v258 = vunpack.c.l.b16 %v33
  %v259 = vunpack.c.h.b16 %v33
  %v260 = vunpack.c.l.b16 %v34
  %v261 = vunpack.c.l.b16 %v35
  %v262 = vunpack.c.h.b16 %v35
  %v263 = vunpack.c.l.b16 %v36
  %v264 = vunpack.c.l.b16 %v37
  %v265 = vunpack.c.h.b16 %v37
  %v266 = vunpack.c.l.b16 %v38
  %v267 = vunpack.c.l.b16 %v39
  %v268 = vunpack.c.h.b16 %v39
  %v269 = vunpack.c.l.b16 %v40
  %v270 = vunpack.c.l.b16 %v41
  %v271 = vunpack.c.h.b16 %v41
  %v272 = vunpack.c.l.b16 %v42
  %v273 = vunpack.c.l.b16 %v43
  %v274 = vunpack.c.h.b16 %v43
  %v275 = vunpack.c.l.b16 %v44
  %v276 = vunpack.c.l.b16 %v45
  %v277 = vunpack.c.h.b16 %v45
  %v278 = vunpack.c.l.b16 %v46
  %v279 = vunpack.c.l.b16 %v47
  %v280 = vunpack.c.h.b16 %v47
  %v281 = vunpack.c.l.b16 %v48
  %v282 = vunpack.c.l.b16 %v49
  %v283 = vunpack.c.h.b16 %v49
  %v284 = vunpack.c.l.b16 %v50
  %v285 = vunpack.c.l.b16 %v51
  %v286 = vunpack.c.h.b16 %v51
  %v287 = vunpack.c.l.b16 %v52
  %v288 = vunpack.c.l.b16 %v53
  %v289 = vunpack.c.h.b16 %v53
  %v290 = vunpack.c.l.b16 %v54
  %v291 = vunpack.c.l.b16 %v55
  %v292 = vunpack.c.h.b16 %v55
  %v293 = vunpack.c.l.b16 %v56
  %v294 = vunpack.c.l.b16 %v57
  %v295 = vunpack.c.h.b16 %v57
  %v296 = vunpack.c.l.b16 %v58
  %v297 = vunpack.c.l.b16 %v59
  %v298 = vunpack.c.h.b16 %v59
  %v299 = vunpack.c.l.b16 %v60
  %v300 = vunpack.c.l.b16 %v61
  %v301 = vunpack.c.h.b16 %v61
  %v302 = vunpack.c.l.b16 %v62
  %v303 = vunpack.c.l.b16 %v63
  %v304 = vunpack.c.h.b16 %v63
  %v305 = vunpack.c.l.b16 %v64
  %v306 = vunpack.c.l.b16 %v65
  %v307 = vunpack.c.h.b16 %v65
  %v308 = vunpack.c.l.b16 %v66
  %v309 = vunpack.c.l.b16 %v67
  %v310 = vunpack.c.h.b16 %v67
  %v311 = vunpack.c.l.b16 %v68
  %v312 = vunpack.c.l.b16 %v69
  %v313 = vunpack.c.h.b16 %v69
  %v314 = vunpack.c.l.b16 %v70
  %v315 = vunpack.c.l.b16 %v71
  %v316 = vunpack.c.h.b16 %v71
  %v317 = vunpack.c.l.b16 %v72
  %v318 = vunpack.c.l.b16 %v73
  %v319 = vunpack.c.h.b16 %v73
  %v320 = vunpack.c.l.b16 %v74
  %v321 = vunpack.c.l.b16 %v75
  %v322 = vunpack.c.h.b16 %v75
  %v323 = vunpack.c.l.b16 %v76
  %v324 = vunpack.c.l.b16 %v77
  %v325 = vunpack.c.h.b16 %v77
  %v326 = vunpack.c.l.b16 %v78
  %v327 = vunpack.c.l.b16 %v79
  %v328 = vunpack.c.h.b16 %v79
  %v329 = vunpack.c.l.b16 %v80
  %v330 = vunpack.c.l.b16 %v81
  %v331 = vunpack.c.h.b16 %v81
  %v332 = vunpack.c.l.b16 %v82
  %v333 = vunpack.c.l.b16 %v83
  %v334 = vunpack.c.h.b16 %v83
  %v335 = vunpack.c.l.b16 %v84
  %v336 = vunpack.c.l.b16 %v85
  %v337 = vunpack.c.h.b16 %v85
  %v338 = vunpack.c.l.b16 %v86
  %v339 = vunpack.c.l.b16 %v87
  %v340 = vunpack.c.h.b16 %v87
  %v341 = vunpack.c.l.b16 %v88
  %v342 = vunpack.c.l.b16 %v89
  %v343 = vunpack.c.h.b16 %v89
  %v344 = vunpack.c.l.b16 %v90
  %v345 = vunpack.c.l.b16 %v91
  %v346 = vunpack.c.h.b16 %v91
  %v347 = vunpack.c.l.b16 %v92
  %v348 = vunpack.c.l.b16 %v93
  %v349 = vunpack.c.h.b16 %v93
  %v350 = vunpack.c.l.b16 %v94
  %v351 = vunpack.c.l.b16 %v95
  %v352 = vunpack.c.h.b16 %v95
  %v353 = vunpack.c.l.b16 %v96
  %v354 = vunpack.c.l.b16 %v97
  %v355 = vunpack.c.h.b16 %v97
  %v356 = vunpack.c.l.b16 %v98
  %v357 = vunpack.c.l.b16 %v99
  %v358 = vunpack.c.h.b16 %v99
  %v359 = vunpack.c.l.b16 %v100
  %v360 = vunpack.c.l.b16 %v101
  %v361 = vunpack.c.h.b16 %v101
  %v362 = vunpack.c.l.b16 %v102
  %v363 = vunpack.c.l.b16 %v103
  %v364 = vunpack.c.h.b16 %v103
  %v365 = vunpack.c.l.b16 %v104
  %v366 = vunpack.c.l.b16 %v105
  %v367 = vunpack.c.h.b16 %v105
  %v368 = vunpack.c.l.b16 %v106
  %v369 = vunpack.c.l.b16 %v107
  %v370 = vunpack.c.h.b16 %v107
  %v371 = vunpack.c.l.b16 %v108
  %v372 = vunpack.c.l.b16 %v109
  %v373 = vunpack.c.h.b16 %v109
  %v374 = vunpack.c.l.b16 %v110
  %v375 = vunpack.c.l.b16 %v111
  %v376 = vunpack.c.h.b16 %v111
  %v377 = vunpack.c.l.b16 %v112
  %v378 = vunpack.c.l.b16 %v113
  %v379 = vunpack.c.h.b16 %v113
  %v380 = vunpack.c.l.b16 %v114
  %v381 = vunpack.c.l.b16 %v115
  %v382 = vunpack.c.h.b16 %v115
  %v383 = vunpack.c.l.b16 %v116
  %v384 = vunpack.c.l.b16 %v117
  %v385 = vunpack.c.h.b16 %v117
  %v386 = vunpack.c.l.b16 %v118
  %v387 = vpack.c.b16 %v246, %v243
  %v388 = vpack.c.b16 %v247, %v244
  %v389 = vpack.c.b16 %v248, %v245
  %v390 = vpack.c.b16 %v252, %v249
  %v391 = vpack.c.b16 %v253, %v250
  %v392 = vpack.c.b16 %v254, %v251
  %v393 = vpack.c.b16 %v258, %v255
  %v394 = vpack.c.b16 %v259, %v256
  %v395 = vpack.c.b16 %v260, %v257
  %v396 = vpack.c.b16 %v264, %v261
  %v397 = vpack.c.b16 %v265, %v262
  %v398 = vpack.c.b16 %v266, %v263
  %v399 = vpack.c.b16 %v270, %v267
  %v400 = vpack.c.b16 %v271, %v268
  %v401 = vpack.c.b16 %v272, %v269
  %v402 = vpack.c.b16 %v276, %v273
  %v403 = vpack.c.b16 %v277, %v274
  %v404 = vpack.c.b16 %v278, %v275
  %v405 = vpack.c.b16 %v282, %v279
  %v406 = vpack.c.b16 %v283, %v280
  %v407 = vpack.c.b16 %v284, %v281
  %v408 = vpack.c.b16 %v288, %v285
  %v409 = vpack.c.b16 %v289, %v286
  %v410 = vpack.c.b16 %v290, %v287
  %v411 = vpack.c.b16 %v294, %v291
  %v412 = vpack.c.b16 %v295, %v292
  %v413 = vpack.c.b16 %v296, %v293
  %v414 = vpack.c.b16 %v300, %v297
  %v415 = vpack.c.b16 %v301, %v298
  %v416 = vpack.c.b16 %v302, %v299
  %v417 = vpack.c.b16 %v306, %v303
  %v418 = vpack.c.b16 %v307, %v304
  %v419 = vpack.c.b16 %v308, %v305
  %v420 = vpack.c.b16 %v312, %v309
  %v421 = vpack.c.b16 %v313, %v310
  %v422 = vpack.c.b16 %v314, %v311
  %v423 = vpack.c.b16 %v318, %v315
  %v424 = vpack.c.b16 %v319, %v316
  %v425 = vpack.c.b16 %v320, %v317
  %v426 = vpack.c.b16 %v324, %v321
  %v427 = vpack.c.b16 %v325, %v322
  %v428 = vpack.c.b16 %v326, %v323
  %v429 = vpack.c.b16 %v330, %v327
  %v430 = vpack.c.b16 %v331, %v328
  %v431 = vpack.c.b16 %v332, %v329
  %v432 = vpack.c.b16 %v336, %v333
  %v433 = vpack.c.b16 %v337, %v334
  %v434 = vpack.c.b16 %v338, %v335
  %v435 = vpack.c.b16 %v342, %v339
  %v436 = vpack.c.b16 %v343, %v340
  %v437 = vpack.c.b16 %v344, %v341
  %v438 = vpack.c.b16 %v348, %v345
  %v439 = vpack.c.b16 %v349, %v346
  %v440 = vpack.c.b16 %v350, %v347
  %v441 = vpack.c.b16 %v354, %v351
  %v442 = vpack.c.b16 %v355, %v352
  %v443 = vpack.c.b16 %v356, %v353
  %v444 = vpack.c.b16 %v360, %v357
  %v445 = vpack.c.b16 %v361, %v358
  %v446 = vpack.c.b16 %v362, %v359
  %v447 = vpack.c.b16 %v366, %v363
  %v448 = vpack.c.b16 %v367, %v364
  %v449 = vpack.c.b16 %v368, %v365
  %v450 = vpack.c.b16 %v372, %v369
  %v451 = vpack.c.b16 %v373, %v370
  %v452 = vpack.c.b16 %v374, %v371
  %v453 = vpack.c.b16 %v378, %v375
  %v454 = vpack.c.b16 %v379, %v376
  %v455 = vpack.c.b16 %v380, %v377
  %v456 = vpack.c.b16 %v384, %v381
  %v457 = vpack.c.b16 %v385, %v382
  %v458 = vpack.c.b16 %v386, %v383
  %531 = vmatprep.subr.bf16.mxu0 %v388
  %532 = vmatpush1.bf16.msra.mxu0 %v387
  %533 = vmatprep.subr.bf16.mxu0 %v391
  %534 = vmatpush1.bf16.msra.mxu0 %v390
  %535 = vmatprep.subr.bf16.mxu0 %v394
  %536 = vmatpush1.bf16.msra.mxu0 %v393
  %537 = vmatprep.subr.bf16.mxu0 %v397
  %538 = vmatpush1.bf16.msra.mxu0 %v396
  %539 = vmatprep.subr.bf16.mxu0 %v400
  %540 = vmatpush1.bf16.msra.mxu0 %v399
  %541 = vmatprep.subr.bf16.mxu0 %v403
  %542 = vmatpush1.bf16.msra.mxu0 %v402
  %543 = vmatprep.subr.bf16.mxu0 %v406
  %544 = vmatpush1.bf16.msra.mxu0 %v405
  %545 = vmatprep.subr.bf16.mxu0 %v409
  %546 = vmatpush1.bf16.msra.mxu0 %v408
  %547 = vmatprep.subr.bf16.mxu0 %v412
  %548 = vmatpush1.bf16.msra.mxu0 %v411
  %549 = vmatprep.subr.bf16.mxu0 %v415
  %550 = vmatpush1.bf16.msra.mxu0 %v414
  %551 = vmatprep.subr.bf16.mxu0 %v418
  %552 = vmatpush1.bf16.msra.mxu0 %v417
  %553 = vmatprep.subr.bf16.mxu0 %v421
  %554 = vmatpush1.bf16.msra.mxu0 %v420
  %555 = vmatprep.subr.bf16.mxu0 %v424
  %556 = vmatpush1.bf16.msra.mxu0 %v423
  %557 = vmatprep.subr.bf16.mxu0 %v427
  %558 = vmatpush1.bf16.msra.mxu0 %v426
  %559 = vmatprep.subr.bf16.mxu0 %v430
  %560 = vmatpush1.bf16.msra.mxu0 %v429
  %561 = vmatprep.subr.bf16.mxu0 %v433
  %562 = vmatpush1.bf16.msra.mxu0 %v432
  %563 = vmatprep.mubr.bf16.mxu0 %v142
  %564 = vmatmul.mubr.bf16.gmra.mrb[0].mxu0 %v141
  %v565 = vpop.f32.mrb[0].mxu0
  %v566 = vadd.f32 %v124, %v565
  %v567 = vpop.f32.mrb[0].mxu0
  %v568 = vadd.f32 %v128, %v567
  %v569 = vpop.f32.mrb[0].mxu0
  %v570 = vpop.f32.mrb[0].mxu0
  %571 = vdwg.mxu0
  %572 = vmatprep.subr.bf16.mxu0 %v436
  %573 = vmatpush1.bf16.msra.mxu0 %v435
  %574 = vmatprep.subr.bf16.mxu0 %v439
  %575 = vmatpush1.bf16.msra.mxu0 %v438
  %576 = vmatprep.subr.bf16.mxu0 %v442
  %577 = vmatpush1.bf16.msra.mxu0 %v441
  %578 = vmatprep.subr.bf16.mxu0 %v445
  %579 = vmatpush1.bf16.msra.mxu0 %v444
  %580 = vmatprep.subr.bf16.mxu0 %v448
  %581 = vmatpush1.bf16.msra.mxu0 %v447
  %582 = vmatprep.subr.bf16.mxu0 %v451
  %583 = vmatpush1.bf16.msra.mxu0 %v450
  %584 = vmatprep.subr.bf16.mxu0 %v454
  %585 = vmatpush1.bf16.msra.mxu0 %v453
  %586 = vmatprep.subr.bf16.mxu0 %v457
  %587 = vmatpush1.bf16.msra.mxu0 %v456
  %588 = vmatprep.subr.bf16.mxu0 0
  %589 = vmatpush1.bf16.msra.mxu0 0
  %590 = vmatprep.subr.bf16.mxu0 0
  %591 = vmatpush1.bf16.msra.mxu0 0
  %592 = vmatprep.subr.bf16.mxu0 0
  %593 = vmatpush1.bf16.msra.mxu0 0
  %594 = vmatprep.subr.bf16.mxu0 0
  %595 = vmatpush1.bf16.msra.mxu0 0
  %596 = vmatprep.subr.bf16.mxu0 0
  %597 = vmatpush1.bf16.msra.mxu0 0
  %598 = vmatprep.subr.bf16.mxu0 0
  %599 = vmatpush1.bf16.msra.mxu0 0
  %600 = vmatprep.subr.bf16.mxu0 0
  %601 = vmatpush1.bf16.msra.mxu0 0
  %602 = vmatprep.subr.bf16.mxu0 0
  %603 = vmatpush1.bf16.msra.mxu0 0
  %604 = vmatprep.mubr.bf16.mxu0 0
  %605 = vmatmul.mubr.bf16.gmra.mrb[0].mxu0 %v143
  %v606 = vpop.f32.mrb[0].mxu0
  %v607 = vadd.f32 %v566, %v606
  %v608 = vpop.f32.mrb[0].mxu0
  %v609 = vadd.f32 %v568, %v608
  %v610 = vpop.f32.mrb[0].mxu0
  %v611 = vpop.f32.mrb[0].mxu0
  %612 = vdwg.mxu0
  %613 = vmatprep.subr.bf16.mxu0 0
  %614 = vmatpush1.bf16.msra.mxu0 %v389
  %615 = vmatprep.subr.bf16.mxu0 0
  %616 = vmatpush1.bf16.msra.mxu0 %v392
  %617 = vmatprep.subr.bf16.mxu0 0
  %618 = vmatpush1.bf16.msra.mxu0 %v395
  %619 = vmatprep.subr.bf16.mxu0 0
  %620 = vmatpush1.bf16.msra.mxu0 %v398
  %621 = vmatprep.subr.bf16.mxu0 0
  %622 = vmatpush1.bf16.msra.mxu0 %v401
  %623 = vmatprep.subr.bf16.mxu0 0
  %624 = vmatpush1.bf16.msra.mxu0 %v404
  %625 = vmatprep.subr.bf16.mxu0 0
  %626 = vmatpush1.bf16.msra.mxu0 %v407
  %627 = vmatprep.subr.bf16.mxu0 0
  %628 = vmatpush1.bf16.msra.mxu0 %v410
  %629 = vmatprep.subr.bf16.mxu0 0
  %630 = vmatpush1.bf16.msra.mxu0 %v413
  %631 = vmatprep.subr.bf16.mxu0 0
  %632 = vmatpush1.bf16.msra.mxu0 %v416
  %633 = vmatprep.subr.bf16.mxu0 0
  %634 = vmatpush1.bf16.msra.mxu0 %v419
  %635 = vmatprep.subr.bf16.mxu0 0
  %636 = vmatpush1.bf16.msra.mxu0 %v422
  %637 = vmatprep.subr.bf16.mxu0 0
  %638 = vmatpush1.bf16.msra.mxu0 %v425
  %639 = vmatprep.subr.bf16.mxu0 0
  %640 = vmatpush1.bf16.msra.mxu0 %v428
  %641 = vmatprep.subr.bf16.mxu0 0
  %642 = vmatpush1.bf16.msra.mxu0 %v431
  %643 = vmatprep.subr.bf16.mxu0 0
  %644 = vmatpush1.bf16.msra.mxu0 %v434
  %645 = vmatprep.mubr.bf16.mxu0 %v142
  %646 = vmatmul.mubr.bf16.gmra.mrb[0].mxu0 %v141
  %v647 = vpop.f32.mrb[0].mxu0
  %v648 = vadd.f32 %v132, %v647
  %v649 = vpop.f32.mrb[0].mxu0
  %v650 = vpop.f32.mrb[0].mxu0
  %v651 = vpop.f32.mrb[0].mxu0
  %652 = vdwg.mxu0
  %653 = vmatprep.subr.bf16.mxu0 0
  %654 = vmatpush1.bf16.msra.mxu0 %v437
  %655 = vmatprep.subr.bf16.mxu0 0
  %656 = vmatpush1.bf16.msra.mxu0 %v440
  %657 = vmatprep.subr.bf16.mxu0 0
  %658 = vmatpush1.bf16.msra.mxu0 %v443
  %659 = vmatprep.subr.bf16.mxu0 0
  %660 = vmatpush1.bf16.msra.mxu0 %v446
  %661 = vmatprep.subr.bf16.mxu0 0
  %662 = vmatpush1.bf16.msra.mxu0 %v449
  %663 = vmatprep.subr.bf16.mxu0 0
  %664 = vmatpush1.bf16.msra.mxu0 %v452
  %665 = vmatprep.subr.bf16.mxu0 0
  %666 = vmatpush1.bf16.msra.mxu0 %v455
  %667 = vmatprep.subr.bf16.mxu0 0
  %668 = vmatpush1.bf16.msra.mxu0 %v458
  %669 = vmatprep.subr.bf16.mxu0 0
  %670 = vmatpush1.bf16.msra.mxu0 0
  %671 = vmatprep.subr.bf16.mxu0 0
  %672 = vmatpush1.bf16.msra.mxu0 0
  %673 = vmatprep.subr.bf16.mxu0 0
  %674 = vmatpush1.bf16.msra.mxu0 0
  %675 = vmatprep.subr.bf16.mxu0 0
  %676 = vmatpush1.bf16.msra.mxu0 0
  %677 = vmatprep.subr.bf16.mxu0 0
  %678 = vmatpush1.bf16.msra.mxu0 0
  %679 = vmatprep.subr.bf16.mxu0 0
  %680 = vmatpush1.bf16.msra.mxu0 0
  %681 = vmatprep.subr.bf16.mxu0 0
  %682 = vmatpush1.bf16.msra.mxu0 0
  %683 = vmatprep.subr.bf16.mxu0 0
  %684 = vmatpush1.bf16.msra.mxu0 0
  %685 = vmatprep.mubr.bf16.mxu0 0
  %686 = vmatmul.mubr.bf16.gmra.mrb[0].mxu0 %v143
  %v687 = vpop.f32.mrb[0].mxu0
  %v688 = vadd.f32 %v648, %v687
  %v689 = vpop.f32.mrb[0].mxu0
  %v690 = vpop.f32.mrb[0].mxu0
  %v691 = vpop.f32.mrb[0].mxu0
  %692 = vdwg.mxu0
  %v693 = vmax.f32 %v607, 0.0
  %v694 = vmax.f32 %v609, 0.0
  %v695 = vmax.f32 %v688, 0.0
  %v696 = vpack.c.bf16 %v693, %v693
  %v697 = vpack.c.bf16 %v694, %v694
  %v698 = vpack.c.bf16 %v695, %v695
  %v699 = vld [vmem:[%s3] sm:$0xf]
  %v700 = vld [vmem:[%s3 + $0x4] sm:$0xf]
  %v701 = vld [vmem:[%s3 + $0x8] sm:$0xf]
  %v702 = vld [vmem:[%s3 + $0xc] sm:$0xf]
  %v703 = vld [vmem:[%s3 + $0x10] sm:$0xf]
  %v704 = vld [vmem:[%s3 + $0x14] sm:$0xf]
  %v705 = vld [vmem:[%s3 + $0x18] sm:$0xf]
  %v706 = vld [vmem:[%s3 + $0x1c] sm:$0xf]
  %v707 = vld [vmem:[%s3 + $0x20] sm:$0xf]
  %v708 = vld [vmem:[%s3 + $0x24] sm:$0xf]
  %v709 = vld [vmem:[%s3 + $0x28] sm:$0xf]
  %v710 = vld [vmem:[%s3 + $0x2c] sm:$0xf]
  %v711 = vld [vmem:[%s3 + $0x30] sm:$0xf]
  %v712 = vld [vmem:[%s3 + $0x34] sm:$0xf]
  %v713 = vld [vmem:[%s3 + $0x38] sm:$0xf]
  %v714 = vld [vmem:[%s3 + $0x3c] sm:$0xf]
  %v715 = vld [vmem:[%s3 + $0x40] sm:$0xf]
  %v716 = vld [vmem:[%s3 + $0x44] sm:$0xf]
  %v717 = vld [vmem:[%s3 + $0x48] sm:$0xf]
  %v718 = vld [vmem:[%s3 + $0x4c] sm:$0xf]
  %v719 = vld [vmem:[%s3 + $0x50] sm:$0xf]
  %v720 = vld [vmem:[%s3 + $0x54] sm:$0xf]
  %v721 = vld [vmem:[%s3 + $0x58] sm:$0xf]
  %v722 = vld [vmem:[%s3 + $0x5c] sm:$0xf]
  %v723 = vld [vmem:[%s3 + $0x60] sm:$0xf]
  %v724 = vld [vmem:[%s3 + $0x64] sm:$0xf]
  %v725 = vld [vmem:[%s3 + $0x68] sm:$0xf]
  %v726 = vld [vmem:[%s3 + $0x6c] sm:$0xf]
  %v727 = vld [vmem:[%s3 + $0x70] sm:$0xf]
  %v728 = vld [vmem:[%s3 + $0x74] sm:$0xf]
  %v729 = vld [vmem:[%s3 + $0x78] sm:$0xf]
  %v730 = vld [vmem:[%s3 + $0x7c] sm:$0xf]
  %v731 = vld [vmem:[%s3 + $0x80] sm:$0xf]
  %v732 = vld [vmem:[%s3 + $0x84] sm:$0xf]
  %v733 = vld [vmem:[%s3 + $0x88] sm:$0xf]
  %v734 = vld [vmem:[%s3 + $0x8c] sm:$0xf]
  %v735 = vld [vmem:[%s3 + $0x90] sm:$0xf]
  %v736 = vld [vmem:[%s3 + $0x94] sm:$0xf]
  %v737 = vld [vmem:[%s3 + $0x98] sm:$0xf]
  %v738 = vld [vmem:[%s3 + $0x9c] sm:$0xf]
  %v739 = vld [vmem:[%s3 + $0xa0] sm:$0xf]
  %v740 = vld [vmem:[%s3 + $0xa4] sm:$0xf]
  %v741 = vld [vmem:[%s3 + $0xa8] sm:$0xf]
  %v742 = vld [vmem:[%s3 + $0xac] sm:$0xf]
  %v743 = vld [vmem:[%s3 + $0xb0] sm:$0xf]
  %v744 = vld [vmem:[%s3 + $0xb4] sm:$0xf]
  %v745 = vld [vmem:[%s3 + $0xb8] sm:$0xf]
  %v746 = vld [vmem:[%s3 + $0xbc] sm:$0xf]
  %v747 = vld [vmem:[%s4] sm:$0x1]
  %v749 = vlaneseq
  %v750 = vshrl.u32 %v749, 7
  %v751 = vsub.s32 0, %v750
  %v752 = vrot.slane %v747, %v751
  %v802 = vunpack.c.l.b16 %v699
  %v803 = vunpack.c.l.b16 %v700
  %v804 = vunpack.c.l.b16 %v701
  %v805 = vunpack.c.l.b16 %v702
  %v806 = vunpack.c.l.b16 %v703
  %v807 = vunpack.c.l.b16 %v704
  %v808 = vunpack.c.l.b16 %v705
  %v809 = vunpack.c.l.b16 %v706
  %v810 = vunpack.c.l.b16 %v707
  %v811 = vunpack.c.l.b16 %v708
  %v812 = vunpack.c.l.b16 %v709
  %v813 = vunpack.c.l.b16 %v710
  %v814 = vunpack.c.l.b16 %v711
  %v815 = vunpack.c.l.b16 %v712
  %v816 = vunpack.c.l.b16 %v713
  %v817 = vunpack.c.l.b16 %v714
  %v818 = vunpack.c.l.b16 %v715
  %v819 = vunpack.c.l.b16 %v716
  %v820 = vunpack.c.l.b16 %v717
  %v821 = vunpack.c.l.b16 %v718
  %v822 = vunpack.c.l.b16 %v719
  %v823 = vunpack.c.l.b16 %v720
  %v824 = vunpack.c.l.b16 %v721
  %v825 = vunpack.c.l.b16 %v722
  %v826 = vunpack.c.l.b16 %v723
  %v827 = vunpack.c.l.b16 %v724
  %v828 = vunpack.c.l.b16 %v725
  %v829 = vunpack.c.l.b16 %v726
  %v830 = vunpack.c.l.b16 %v727
  %v831 = vunpack.c.l.b16 %v728
  %v832 = vunpack.c.l.b16 %v729
  %v833 = vunpack.c.l.b16 %v730
  %v834 = vunpack.c.l.b16 %v731
  %v835 = vunpack.c.l.b16 %v732
  %v836 = vunpack.c.l.b16 %v733
  %v837 = vunpack.c.l.b16 %v734
  %v838 = vunpack.c.l.b16 %v735
  %v839 = vunpack.c.l.b16 %v736
  %v840 = vunpack.c.l.b16 %v737
  %v841 = vunpack.c.l.b16 %v738
  %v842 = vunpack.c.l.b16 %v739
  %v843 = vunpack.c.l.b16 %v740
  %v844 = vunpack.c.l.b16 %v741
  %v845 = vunpack.c.l.b16 %v742
  %v846 = vunpack.c.l.b16 %v743
  %v847 = vunpack.c.l.b16 %v744
  %v848 = vunpack.c.l.b16 %v745
  %v849 = vunpack.c.l.b16 %v746
  %v850 = vpack.c.b16 %v803, %v802
  %v851 = vpack.c.b16 %v805, %v804
  %v852 = vpack.c.b16 %v807, %v806
  %v853 = vpack.c.b16 %v809, %v808
  %v854 = vpack.c.b16 %v811, %v810
  %v855 = vpack.c.b16 %v813, %v812
  %v856 = vpack.c.b16 %v815, %v814
  %v857 = vpack.c.b16 %v817, %v816
  %v858 = vpack.c.b16 %v819, %v818
  %v859 = vpack.c.b16 %v821, %v820
  %v860 = vpack.c.b16 %v823, %v822
  %v861 = vpack.c.b16 %v825, %v824
  %v862 = vpack.c.b16 %v827, %v826
  %v863 = vpack.c.b16 %v829, %v828
  %v864 = vpack.c.b16 %v831, %v830
  %v865 = vpack.c.b16 %v833, %v832
  %v866 = vpack.c.b16 %v835, %v834
  %v867 = vpack.c.b16 %v837, %v836
  %v868 = vpack.c.b16 %v839, %v838
  %v869 = vpack.c.b16 %v841, %v840
  %v870 = vpack.c.b16 %v843, %v842
  %v871 = vpack.c.b16 %v845, %v844
  %v872 = vpack.c.b16 %v847, %v846
  %v873 = vpack.c.b16 %v849, %v848
  %898 = vmatprep.subr.bf16.mxu0 0
  %899 = vmatpush1.bf16.msra.mxu0 %v850
  %900 = vmatprep.subr.bf16.mxu0 0
  %901 = vmatpush1.bf16.msra.mxu0 %v851
  %902 = vmatprep.subr.bf16.mxu0 0
  %903 = vmatpush1.bf16.msra.mxu0 %v852
  %904 = vmatprep.subr.bf16.mxu0 0
  %905 = vmatpush1.bf16.msra.mxu0 %v853
  %906 = vmatprep.subr.bf16.mxu0 0
  %907 = vmatpush1.bf16.msra.mxu0 %v854
  %908 = vmatprep.subr.bf16.mxu0 0
  %909 = vmatpush1.bf16.msra.mxu0 %v855
  %910 = vmatprep.subr.bf16.mxu0 0
  %911 = vmatpush1.bf16.msra.mxu0 %v856
  %912 = vmatprep.subr.bf16.mxu0 0
  %913 = vmatpush1.bf16.msra.mxu0 %v857
  %914 = vmatprep.subr.bf16.mxu0 0
  %915 = vmatpush1.bf16.msra.mxu0 %v858
  %916 = vmatprep.subr.bf16.mxu0 0
  %917 = vmatpush1.bf16.msra.mxu0 %v859
  %918 = vmatprep.subr.bf16.mxu0 0
  %919 = vmatpush1.bf16.msra.mxu0 %v860
  %920 = vmatprep.subr.bf16.mxu0 0
  %921 = vmatpush1.bf16.msra.mxu0 %v861
  %922 = vmatprep.subr.bf16.mxu0 0
  %923 = vmatpush1.bf16.msra.mxu0 %v862
  %924 = vmatprep.subr.bf16.mxu0 0
  %925 = vmatpush1.bf16.msra.mxu0 %v863
  %926 = vmatprep.subr.bf16.mxu0 0
  %927 = vmatpush1.bf16.msra.mxu0 %v864
  %928 = vmatprep.subr.bf16.mxu0 0
  %929 = vmatpush1.bf16.msra.mxu0 %v865
  %930 = vmatprep.mubr.bf16.mxu0 %v697
  %931 = vmatmul.mubr.bf16.gmra.mrb[0].mxu0 %v696
  %v932 = vpop.f32.mrb[0].mxu0
  %v933 = vadd.f32 %v752, %v932
  %v934 = vpop.f32.mrb[0].mxu0
  %v935 = vpop.f32.mrb[0].mxu0
  %v936 = vpop.f32.mrb[0].mxu0
  %937 = vdwg.mxu0
  %938 = vmatprep.subr.bf16.mxu0 0
  %939 = vmatpush1.bf16.msra.mxu0 %v866
  %940 = vmatprep.subr.bf16.mxu0 0
  %941 = vmatpush1.bf16.msra.mxu0 %v867
  %942 = vmatprep.subr.bf16.mxu0 0
  %943 = vmatpush1.bf16.msra.mxu0 %v868
  %944 = vmatprep.subr.bf16.mxu0 0
  %945 = vmatpush1.bf16.msra.mxu0 %v869
  %946 = vmatprep.subr.bf16.mxu0 0
  %947 = vmatpush1.bf16.msra.mxu0 %v870
  %948 = vmatprep.subr.bf16.mxu0 0
  %949 = vmatpush1.bf16.msra.mxu0 %v871
  %950 = vmatprep.subr.bf16.mxu0 0
  %951 = vmatpush1.bf16.msra.mxu0 %v872
  %952 = vmatprep.subr.bf16.mxu0 0
  %953 = vmatpush1.bf16.msra.mxu0 %v873
  %954 = vmatprep.subr.bf16.mxu0 0
  %955 = vmatpush1.bf16.msra.mxu0 0
  %956 = vmatprep.subr.bf16.mxu0 0
  %957 = vmatpush1.bf16.msra.mxu0 0
  %958 = vmatprep.subr.bf16.mxu0 0
  %959 = vmatpush1.bf16.msra.mxu0 0
  %960 = vmatprep.subr.bf16.mxu0 0
  %961 = vmatpush1.bf16.msra.mxu0 0
  %962 = vmatprep.subr.bf16.mxu0 0
  %963 = vmatpush1.bf16.msra.mxu0 0
  %964 = vmatprep.subr.bf16.mxu0 0
  %965 = vmatpush1.bf16.msra.mxu0 0
  %966 = vmatprep.subr.bf16.mxu0 0
  %967 = vmatpush1.bf16.msra.mxu0 0
  %968 = vmatprep.subr.bf16.mxu0 0
  %969 = vmatpush1.bf16.msra.mxu0 0
  %970 = vmatprep.mubr.bf16.mxu0 0
  %971 = vmatmul.mubr.bf16.gmra.mrb[0].mxu0 %v698
  %v972 = vpop.f32.mrb[0].mxu0
  %v973 = vadd.f32 %v933, %v972
  %v974 = vpop.f32.mrb[0].mxu0
  %v975 = vpop.f32.mrb[0].mxu0
  %v976 = vpop.f32.mrb[0].mxu0
  %977 = vdwg.mxu0
  %978 = vmax.xlane.f32.xlu0 %v973
  %v979 = vpop.xlane.xlu0 %978
  %v980 = vsub.f32 %v973, %v979
  %v981 = vmul.f32 %v980, 1.442695
  %v982 = vpow.pop %v981
  %983 = vadd.xlane.f32.xlu0 %v982
  %v984 = vpop.xlane.xlu0 %983
  %v985 = vrcp.pop %v984
  %v986 = vmul.f32 %v982, %v985
  %987 = vst [vmem:[%s5] sm:$0xff] %v986
  // Predicated region
  $region22: #{tl_network.1} parent=0 // pred_check
    _
  $region23: #{tl_network.1} parent=0 // pred_check_branch
    %989 = sbr.rel (0) target = $region25
  $region24: #{tl_network.1} parent=0 // pred_region
    _
  $region25: #{tl_network.1} parent=0 // pred_fallthru
    _
  // Predicated region
  $region26: #{tl_network.1} parent=0 // pred_check
    _
  $region27: #{tl_network.1} parent=0 // pred_check_branch
    %991 = sbr.rel (0) target = $region29
  $region28: #{tl_network.1} parent=0 // pred_region
    _
  $region29: #{tl_network.1} parent=0 // pred_fallthru
    _

</llo_original>
